<compile_context>
chip_gen: v5e
topology: v5e:2x2
jax: 0.10.0
libtpu: 0.0.40
codegen_flags: <defaults>
</compile_context>

<pallas_src>
import jax
import jax.numpy as jnp
from jax.experimental import pallas as pl
from jax.experimental.pallas import tpu as pltpu

D_MODEL = 32
VOCAB = 20
V_PAD = 128                 # lane-dense output width
W_ROWS = D_MODEL + 8        # rows 0:D_MODEL = weights, row D_MODEL = bias, rest zero


# ----------------------------- Pallas kernel --------------------------------
def _generator_kernel(x_ref, wb_ref, o_ref):
    # x: [M, D]   wb: [W_ROWS, V_PAD] (rows 0:D = W^T, row D = bias)   o: [M, V_PAD]
    w = wb_ref[:D_MODEL, :]                      # static, sublane-aligned slice
    b = wb_ref[D_MODEL:D_MODEL + 1, :]           # [1, V_PAD] bias row
    y = jnp.dot(x_ref[...], w, preferred_element_type=jnp.float32)
    o_ref[...] = (y + b).astype(o_ref.dtype)


# ----------------------------- param packing ---------------------------------
def pack_generator_params(w, b):
    """w: [d_model, vocab], b: [vocab] -> single padded [W_ROWS, V_PAD] slab."""
    wb = jnp.zeros((W_ROWS, V_PAD), jnp.float32)
    wb = wb.at[:D_MODEL, :VOCAB].set(w.astype(jnp.float32))
    wb = wb.at[D_MODEL, :VOCAB].set(b.astype(jnp.float32))
    return wb


# ----------------------------- wrapper ---------------------------------------
def generator_forward(params, x):
    """Generator.forward(x): linear d_model -> vocab (no softmax in reference)."""
    *lead, d = x.shape
    m = 1
    for s in lead:
        m *= s
    x2 = x.reshape(m, d)                    # contiguous reshape: free in XLA
    wb = params["wb"]                       # [W_ROWS, V_PAD] packed weight+bias

    out = pl.pallas_call(
        _generator_kernel,
        out_shape=jax.ShapeDtypeStruct((m, V_PAD), jnp.float32),
        in_specs=[
            pl.BlockSpec(memory_space=pltpu.MemorySpace.VMEM),
            pl.BlockSpec(memory_space=pltpu.MemorySpace.VMEM),
        ],
        out_specs=pl.BlockSpec(memory_space=pltpu.MemorySpace.VMEM),
        cost_estimate=pl.CostEstimate(
            flops=2 * m * d * V_PAD,
            transcendentals=0,
            bytes_accessed=4 * (m * d + W_ROWS * V_PAD + m * V_PAD),
        ),
    )(x2, wb)

    # padded lanes (>= VOCAB) are exact zeros; slice them off before returning.
    return out[:, :VOCAB].reshape(*lead, VOCAB)


# ----------------------------- main -------------------------------------------
if __name__ == "__main__":
    B, T = 2, 8  # decoder hidden states [B, T, d_model] feed the generator

    root = jax.random.PRNGKey(0)
    k_w, k_b, k_x = jax.random.split(root, 3)

    w = 0.02 * jax.random.normal(k_w, (D_MODEL, VOCAB), jnp.float32)
    b = 0.02 * jax.random.normal(k_b, (VOCAB,), jnp.float32)
    x = jax.random.normal(k_x, (B, T, D_MODEL), jnp.float32)

    params = {"wb": pack_generator_params(w, b)}

    fwd = jax.jit(generator_forward)
    out = fwd(params, x)
    jax.block_until_ready(out)

    # correctness vs. pure-JAX reference of nn.Linear semantics
    ref = jnp.einsum("btd,dv->btv", x, w) + b

    assert out.shape == (B, T, VOCAB)
    assert bool(jnp.all(jnp.isfinite(out)))
    assert bool(jnp.allclose(out, ref, atol=1e-5, rtol=1e-5))
    print("KERNEL_OK")
</pallas_src>

<mosaic_0001>
module attributes {stable_mosaic.version = 11 : i64} {
  func.func @_generator_kernel(%arg0: memref<16x32xf32, #tpu.memory_space<vmem>>, %arg1: memref<40x128xf32, #tpu.memory_space<vmem>>, %arg2: memref<16x128xf32, #tpu.memory_space<vmem>>) attributes {dimension_semantics = [], scalar_prefetch = 0 : i64, scratch_operands = 0 : i64, tpu.core_type = #tpu.core_type<tc>} {
    %c0 = arith.constant 0 : index
    %c0_0 = arith.constant 0 : index
    %0 = vector.load %arg1[%c0, %c0_0] : memref<40x128xf32, #tpu.memory_space<vmem>>, vector<32x128xf32>
    %c32 = arith.constant 32 : index
    %c0_1 = arith.constant 0 : index
    %1 = vector.load %arg1[%c32, %c0_1] : memref<40x128xf32, #tpu.memory_space<vmem>>, vector<1x128xf32>
    %c0_2 = arith.constant 0 : index
    %c0_3 = arith.constant 0 : index
    %2 = vector.load %arg0[%c0_2, %c0_3] : memref<16x32xf32, #tpu.memory_space<vmem>>, vector<16x32xf32>
    %cst = arith.constant dense<0.000000e+00> : vector<16x128xf32>
    %3 = tpu.matmul %2, %0, %cst {dimension_numbers = #tpu.dot_dimension_numbers<[1], [0], [0], [1], [0, 0, 1, 1], [], []>} : vector<16x32xf32>, vector<32x128xf32>, vector<16x128xf32> -> vector<16x128xf32>
    %4 = vector.broadcast %1 : vector<1x128xf32> to vector<16x128xf32>
    %5 = arith.addf %3, %4 : vector<16x128xf32>
    %c0_4 = arith.constant 0 : index
    %c0_5 = arith.constant 0 : index
    %6 = vector.load %arg2[%c0_4, %c0_5] : memref<16x128xf32, #tpu.memory_space<vmem>>, vector<16x128xf32>
    tpu.vector_store %arg2[%c0_4, %c0_5], %5 {strides = array<i32>} : memref<16x128xf32, #tpu.memory_space<vmem>>, vector<16x128xf32>,
    return
  }
}

</mosaic_0001>

<llo_original>
// kernel: generator_forward.1
$region0: #{generator_forward.1}
  #allocation0 [shape = 'u32[]', space=smem, size = 0x4, offset = 0x4, fixed_abs, tag = 'smem constant byte address 0x4 - core index']
  #allocation1 [shape = 'u32[72,128]{1,0:T(1,128)}', space=vmem, size = 0x9000, scoped, tag = 'internal scratch']
  %s0 = inlined_call_operand.hbm [shape: f32[16,32], index: 0, kind: input, shape index: {}]
  %s1 = inlined_call_operand.hbm [shape: f32[40,128], index: 1, kind: input, shape index: {}]
  %s2 = inlined_call_operand.vmem [shape: f32[16,128], index: 2, kind: output, shape index: {}]
  %s3 = sld [smem:[#allocation0]]
  $region26: #{generator_forward.1} parent=0
    _
  %s5 = ssub.s32 1, %s3
  %s6 = scalar_select 0, %s5, %s3
  $region1: #{generator_forward.1} parent=0
    #allocation2 [shape = 'u8[8192]{0}', space=vmem, size = 0x2000, scoped, tag = 'input window, operand 0, single buffered']
    #allocation3 [shape = 's32[1]{0}', space=sflag, size = 0x4, scoped, tag = 'scoped memory for generator_forward.1']
    #allocation4 [shape = 'u8[20480]{0}', space=vmem, size = 0x5000, scoped, tag = 'input window, operand 1, single buffered']
    #allocation5 [shape = 's32[1]{0}', space=sflag, size = 0x4, scoped, tag = 'scoped memory for generator_forward.1']
    %7 = vsyncpa [#allocation3], 0
    %8 = vsyncpa [#allocation5], 0
    // Predicated region
    $region2: #{generator_forward.1} parent=1 // pred_check
      _
    $region3: #{generator_forward.1} parent=1 // pred_check_branch
      %10 = sbr.rel (0) target = $region5
    $region4: #{generator_forward.1} parent=1 // pred_region
      %12 = vsyncadd [#allocation3], 0
      %s13 = sshll.u32 %s0, 4
      %s14 = int_to_ptr.hbm [resolvable:$true] %s13
      %s15 = sshll.u32 [#allocation2], 4
      %s16 = int_to_ptr.vmem [resolvable:$true] %s15
      %21 = dma.hbm_to_vmem [thread:$0]  %s14, 256, %s16, [#allocation3], 128, 128, 8
    $region5: #{generator_forward.1} parent=1 // pred_fallthru
      _
    // Predicated region
    $region6: #{generator_forward.1} parent=1 // pred_check
      _
    $region7: #{generator_forward.1} parent=1 // pred_check_branch
      %23 = sbr.rel (0) target = $region9
    $region8: #{generator_forward.1} parent=1 // pred_region
      %25 = vsyncadd [#allocation5], 0
      %s26 = sshll.u32 %s1, 4
      %s27 = int_to_ptr.hbm [resolvable:$true] %s26
      %s28 = sshll.u32 [#allocation4], 4
      %s29 = int_to_ptr.vmem [resolvable:$true] %s28
      %34 = dma.hbm_to_vmem [thread:$0]  %s27, 640, %s29, [#allocation5], 128, 128, 8
    $region9: #{generator_forward.1} parent=1 // pred_fallthru
      _
    // Predicated region
    $region10: #{generator_forward.1} parent=1 // pred_check
      _
    $region11: #{generator_forward.1} parent=1 // pred_check_branch
      %36 = sbr.rel (0) target = $region13
    $region12: #{generator_forward.1} parent=1 // pred_region
      %38 = dma.done [#allocation3], 256
    $region13: #{generator_forward.1} parent=1 // pred_fallthru
      _
    // Predicated region
    $region14: #{generator_forward.1} parent=1 // pred_check
      _
    $region15: #{generator_forward.1} parent=1 // pred_check_branch
      %40 = sbr.rel (0) target = $region17
    $region16: #{generator_forward.1} parent=1 // pred_region
      %42 = dma.done [#allocation5], 640
    $region17: #{generator_forward.1} parent=1 // pred_fallthru
      _
    %v43 = vld [vmem:[#allocation4] sm:$0xff]
    %v44 = vld [vmem:[#allocation4 + $0x8] sm:$0xff]
    %v45 = vld [vmem:[#allocation4 + $0x10] sm:$0xff]
    %v46 = vld [vmem:[#allocation4 + $0x18] sm:$0xff]
    %v47 = vld [vmem:[#allocation4 + $0x20] sm:$0x1]
    %v48 = vld [vmem:[#allocation2] sm:$0xff]
    %v49 = vld [vmem:[#allocation2 + $0x8] sm:$0xff]
    %v50 = vperm.slane %v47, 0
    %vm51 = vcmask 261120
    %v53 = vsel %vm51, %v48, 0
    %v56 = vsel %vm51, %v49, 0
    %58 = vmatpush.msra.mxu0 0.0
    %59 = vmatpush.msra.mxu0 0.0
    %60 = vmatpush.msra.mxu0 0.0
    %61 = vmatpush.msra.mxu0 0.0
    %62 = vmatpush.msra.mxu0 0.0
    %63 = vmatpush.msra.mxu0 0.0
    %64 = vmatpush.msra.mxu0 0.0
    %65 = vmatpush.msra.mxu0 0.0
    %66 = vmatpush.msra.mxu0 0.0
    %67 = vmatpush.msra.mxu0 0.0
    %68 = vmatpush.msra.mxu0 0.0
    %69 = vmatpush.msra.mxu0 0.0
    %70 = vmatpush.msra.mxu0 %v46
    %71 = vmatpush.msra.mxu0 %v45
    %72 = vmatpush.msra.mxu0 %v44
    %73 = vmatpush.msra.mxu0 %v43
    %74 = vmatmul.f32.gmra.mxu0 %v53
    %v75 = vpop.f32.mrf.mxu0
    %v76 = vadd.f32 %v50, %v75
    %77 = vmatmul.f32.gmra.mxu0 %v56
    %v78 = vpop.f32.mrf.mxu0
    %v79 = vadd.f32 %v50, %v78
    %80 = vdwg.mxu0
    %81 = vst [vmem:[%s2] sm:$0xff] %v76
    %82 = vst [vmem:[%s2 + $0x8] sm:$0xff] %v79
    // Predicated region
    $region18: #{generator_forward.1} parent=1 // pred_check
      _
    $region19: #{generator_forward.1} parent=1 // pred_check_branch
      %84 = sbr.rel (0) target = $region21
    $region20: #{generator_forward.1} parent=1 // pred_region
      _
    $region21: #{generator_forward.1} parent=1 // pred_fallthru
      _
    // Predicated region
    $region22: #{generator_forward.1} parent=1 // pred_check
      _
    $region23: #{generator_forward.1} parent=1 // pred_check_branch
      %86 = sbr.rel (0) target = $region25
    $region24: #{generator_forward.1} parent=1 // pred_region
      _
    $region25: #{generator_forward.1} parent=1 // pred_fallthru
      _
    %87 = vsyncpa [#allocation3], 1
    %88 = vsyncpa [#allocation5], 1

</llo_original>
